<compile_context>
chip_gen: v7x
topology: tpu7x:2x2x1
jax: 0.10.0
libtpu: 0.0.40
codegen_flags: <defaults>
</compile_context>

<pallas_src>
import functools

import jax
import jax.numpy as jnp
from jax.experimental import pallas as pl
from jax.experimental.pallas import tpu as pltpu

# ----------------------------- model constants -----------------------------
PATCH = 16          # vit_patch_size
GAMMA = 0.2         # correlation threshold
C_DINO = 32         # stub DINO feature dim
C_CLIP = 32         # stub CLIP feature dim
N_CLS = 8           # number of class embeddings
EPS = 1e-12
IMAGENET_MEAN = jnp.array([0.485, 0.456, 0.406], jnp.float32)
IMAGENET_STD = jnp.array([0.229, 0.224, 0.225], jnp.float32)


# ------------------------------ Pallas kernel -------------------------------
def dinoclip_fused_kernel(dino_ref, clip_aug_ref, clsw_ref, out_ref, *,
                          gamma, tile_n, c_clip):
    """Fused get_dino_corrs + compute_weighted_pool + decode_head.cls_seg.

    One grid step = one image x one tile of tile_n query positions.  The
    [NP, tile_n] correlation block is built, thresholded, and consumed entirely
    in VMEM — it never touches HBM.
    """
    keys = dino_ref[...]                                  # [NP, Cd] bf16, pre-normalized
    q0 = pl.multiple_of(pl.program_id(1) * tile_n, 128)
    queries = dino_ref[pl.ds(q0, tile_n), :]              # [TN, Cd] bf16 (sliced, no extra DMA)

    # corr[k, q] = <dino[:, k], dino[:, q]>  — canonical A @ B^T on the MXU:
    # the big keys operand needs no transpose; only the small query tile does.
    corr = jax.lax.dot_general(
        keys, queries, dimension_numbers=(((1,), (1,)), ((), ())),
        preferred_element_type=jnp.float32)               # [NP, TN] f32
    # gamma-threshold in bf16 (2 elems/lane on v6e/v7x VPU; reference mirrors
    # the same bf16 rounding so near-threshold values agree bit-for-bit).
    corr = corr.astype(jnp.bfloat16)
    corr = jnp.where(corr < gamma, 0.0, corr)             # bf16

    # Weighted pooling.  clip_aug carries a ones row at index c_clip, so this
    # single MXU matmul also produces the per-position row-sum (denominator).
    pooled_aug = jnp.dot(clip_aug_ref[...], corr,
                         preferred_element_type=jnp.float32)   # [Ca, TN] f32
    pooled = pooled_aug[:c_clip, :]                             # [Cc, TN]
    denom = pooled_aug[c_clip:c_clip + 1, :]                    # [1,  TN]
    # approx reciprocal -> EUP slot; the per-column scale error cancels in the
    # L2 normalization below.  Zero-padded query columns give denom==0 and
    # pooled==0, hence zero logits (no NaN/Inf thanks to +1e-6 and +EPS).
    pooled = pooled * pl.reciprocal(denom + 1e-6, approx=True)

    # decode_head.cls_seg: channel-wise L2 norm + 1x1 conv with class embeds.
    pooled = pooled * jax.lax.rsqrt(
        jnp.sum(pooled * pooled, axis=0, keepdims=True) + EPS)
    out_ref[...] = jnp.dot(clsw_ref[...], pooled.astype(jnp.bfloat16),
                           preferred_element_type=jnp.float32)  # [K, TN]


def _kernel_vmem_bytes(np_, tile_n, c_d, c_aug, k):
    """Rough VMEM working-set estimate (double-buffered I/O + intermediates)."""
    bufs = 2 * (np_ * c_d * 2            # dino keys bf16
                + c_aug * np_ * 2        # clip_aug bf16
                + k * c_d * 2            # cls weights bf16
                + k * tile_n * 4)        # output f32
    interm = (np_ * tile_n * (4 + 2)     # corr f32 + bf16
              + tile_n * c_d * 2         # sliced query tile
              + 4 * c_aug * tile_n * 4)  # pooled_aug & friends
    return bufs + interm


def _pick_tile(np_, batch, c_d, c_aug, k, budget_bytes=24 << 20):
    """Largest query tile (multiple of 128 dividing NP) under the VMEM budget,
    keeping >=2 independent grid steps so both v7x TensorCores get work."""
    for t in range(np_, 127, -128):
        if np_ % t:
            continue
        if batch * (np_ // t) < 2 and t > 128:
            continue
        if _kernel_vmem_bytes(np_, t, c_d, c_aug, k) <= budget_bytes:
            return t
    return 128


def dinoclip_pooled_logits(dino_n, clip_aug, cls_w, *, gamma, tile_n, c_clip,
                           vmem_limit):
    """pallas_call wrapper: grid = (batch, query-tiles)."""
    B, NP, C_d = dino_n.shape
    C_aug = clip_aug.shape[1]
    K, C_c = cls_w.shape
    n_tiles = NP // tile_n
    kernel = functools.partial(dinoclip_fused_kernel, gamma=gamma,
                               tile_n=tile_n, c_clip=c_clip)
    return pl.pallas_call(
        kernel,
        out_shape=jax.ShapeDtypeStruct((B, K, NP), jnp.float32),
        grid=(B, n_tiles),
        in_specs=[
            # pre-normalized DINO features (keys), resident across query tiles
            pl.BlockSpec((pl.Squeezed(), NP, C_d), lambda b, j: (b, 0, 0)),
            # CLIP features (+ ones / zero pad rows) for the image, resident
            pl.BlockSpec((pl.Squeezed(), C_aug, NP), lambda b, j: (b, 0, 0)),
            # class embeddings (shared)
            pl.BlockSpec((K, C_c), lambda b, j: (0, 0)),
        ],
        out_specs=pl.BlockSpec((pl.Squeezed(), K, tile_n), lambda b, j: (b, 0, j)),
        compiler_params=pltpu.CompilerParams(
            dimension_semantics=("parallel", "parallel"),
            vmem_limit_bytes=vmem_limit,
        ),
    )(dino_n, clip_aug, cls_w)


# ------------------------------- JAX glue -----------------------------------
def _round_up(v, m):
    return (v + m - 1) // m * m


def make_input_divisible(x, patch=PATCH):
    """Zero-pad H, W so they are divisible by the patch size (NCHW)."""
    B, C, H, W = x.shape
    pad_h = (patch - H % patch) % patch
    pad_w = (patch - W % patch) % patch
    return jnp.pad(x, ((0, 0), (0, 0), (0, pad_h), (0, pad_w)))


def _patchify(x, patch=PATCH):
    """NCHW image -> [B, N, C*patch*patch] flattened non-overlapping patches."""
    B, C, H, W = x.shape
    hf, wf = H // patch, W // patch
    x = x.reshape(B, C, hf, patch, wf, patch)
    x = x.transpose(0, 2, 4, 1, 3, 5).reshape(B, hf * wf, C * patch * patch)
    return x, (hf, wf)


# TODO(synk): the real DINO ViT and CLIP visual backbones are frozen external
# models; they are replaced here by deterministic linear patch-embedding stubs.
def dino_backbone_stub(x, w_dino):
    """Stand-in for self.vit_encoder + extract_feats -> [B, C_dino, N]."""
    x = (x - IMAGENET_MEAN[None, :, None, None]) / IMAGENET_STD[None, :, None, None]
    patches, (hf, wf) = _patchify(x)
    feats = jnp.einsum("bnp,dp->bdn", patches, w_dino)  # [B, C_dino, N]
    return feats, (hf, wf)


def clip_backbone_stub(x, w_clip):
    """Stand-in for self.clip_backbone dense features -> [B, C_clip, hf, wf]."""
    patches, (hf, wf) = _patchify(x)
    feats = jnp.einsum("bnp,dp->bdn", patches, w_clip)  # [B, C_clip, N]
    return feats.reshape(x.shape[0], -1, hf, wf)


def dinoclip_forward(x, params, *, gamma=GAMMA):
    """Full DinoCLIP.forward (apply_found=False path)."""
    x = make_input_divisible(x)

    # get_clip_features / get_dino_features (frozen backbones, stubbed)
    clip_feat = clip_backbone_stub(x, params["w_clip"])               # [B, Cc, hf, wf]
    B, Cc, hf, wf = clip_feat.shape
    dino_feats, (hfd, wfd) = dino_backbone_stub(x, params["w_dino"])  # [B, Cd, N]
    # TODO(synk): bilinear resize branch (clip grid != corr grid) not needed;
    # both stubs share the same patch grid.
    assert (hfd, wfd) == (hf, wf)

    N = hf * wf
    NP = _round_up(N, 128)
    pad = NP - N

    # Hoisted per-image work (XLA-fused, runs once instead of once per tile):
    # channel-L2 normalization, bf16 cast, and transpose to [B, NP, Cd] so the
    # Gram matmul's big operand is already in MXU-LHS orientation.
    dino_p = jnp.pad(dino_feats, ((0, 0), (0, 0), (0, pad)))          # [B, Cd, NP] f32
    dino_n = dino_p * jax.lax.rsqrt(
        jnp.sum(dino_p * dino_p, axis=1, keepdims=True) + EPS)
    dino_n = jnp.transpose(dino_n, (0, 2, 1)).astype(jnp.bfloat16)    # [B, NP, Cd]

    # CLIP features + ones row (pooling denominator from the same MXU matmul)
    # + zero rows so the sublane count is a multiple of 8.
    clip_flat = jnp.pad(clip_feat.reshape(B, Cc, N), ((0, 0), (0, 0), (0, pad)))
    C_aug = _round_up(Cc + 1, 8)
    ones_row = jnp.ones((B, 1, NP), clip_flat.dtype)
    zero_rows = jnp.zeros((B, C_aug - Cc - 1, NP), clip_flat.dtype)
    clip_aug = jnp.concatenate([clip_flat, ones_row, zero_rows],
                               axis=1).astype(jnp.bfloat16)           # [B, Ca, NP]

    cls_w = params["cls_emb"].astype(jnp.bfloat16)                    # [K, Cc]

    tile_n = _pick_tile(NP, B, dino_n.shape[-1], C_aug, N_CLS)
    vmem_limit = int(min(max(4 * _kernel_vmem_bytes(NP, tile_n, dino_n.shape[-1],
                                                    C_aug, N_CLS),
                             16 * 1024 * 1024),
                         48 * 1024 * 1024))
    logits = dinoclip_pooled_logits(dino_n, clip_aug, cls_w, gamma=gamma,
                                    tile_n=tile_n, c_clip=Cc,
                                    vmem_limit=vmem_limit)            # [B, K, NP]
    return logits[:, :, :N].reshape(B, N_CLS, hf, wf)


def dinoclip_reference(x, params, *, gamma=GAMMA):
    """Pure-JAX reference with the same precision policy as the fused kernel
    (bf16 matmul inputs, f32 accumulation, bf16 gamma-threshold)."""
    x = make_input_divisible(x)
    clip_feat = clip_backbone_stub(x, params["w_clip"])
    B, Cc, hf, wf = clip_feat.shape
    dino_feats, _ = dino_backbone_stub(x, params["w_dino"])

    fn = dino_feats * jax.lax.rsqrt(
        jnp.sum(dino_feats * dino_feats, axis=1, keepdims=True) + EPS)
    fn = fn.astype(jnp.bfloat16)
    corrs = jnp.einsum("bck,bcq->bkq", fn, fn,
                       preferred_element_type=jnp.float32)            # [B, N, N]
    corrs = corrs.astype(jnp.bfloat16)
    corrs = jnp.where(corrs < gamma, 0.0, corrs)

    clip_flat = clip_feat.reshape(B, Cc, hf * wf).astype(jnp.bfloat16)
    pooled = jnp.einsum("bck,bkq->bcq", clip_flat, corrs,
                        preferred_element_type=jnp.float32)           # [B, Cc, N]
    denom = jnp.sum(corrs.astype(jnp.float32), axis=1, keepdims=True) # [B, 1, N]
    pooled = pooled / (denom + 1e-6)
    pooled = pooled * jax.lax.rsqrt(
        jnp.sum(pooled * pooled, axis=1, keepdims=True) + EPS)
    logits = jnp.einsum("kc,bcq->bkq", params["cls_emb"].astype(jnp.bfloat16),
                        pooled.astype(jnp.bfloat16),
                        preferred_element_type=jnp.float32)
    return logits.reshape(B, N_CLS, hf, wf)


# --------------------------------- driver -----------------------------------
if __name__ == "__main__":
    key = jax.random.PRNGKey(0)
    kx, kd, kc, ke = jax.random.split(key, 4)

    # Intentionally not patch-divisible (238x254 -> padded to 240x256), giving a
    # 15x16 = 240 patch grid that gets lane-padded to 256; with B=2 the picker
    # chooses tile_n = 256, i.e. grid = (2, 1): one maximal tile per image and
    # still two independent steps for v7x's two TensorCores.
    x = jax.random.uniform(kx, (2, 3, 238, 254), jnp.float32)

    params = {
        "w_dino": 0.02 * jax.random.normal(kd, (C_DINO, 3 * PATCH * PATCH), jnp.float32),
        "w_clip": 0.02 * jax.random.normal(kc, (C_CLIP, 3 * PATCH * PATCH), jnp.float32),
        "cls_emb": 0.05 * jax.random.normal(ke, (N_CLS, C_CLIP), jnp.float32),
    }

    out = jax.block_until_ready(dinoclip_forward(x, params))
    ref = jax.block_until_ready(dinoclip_reference(x, params))

    assert out.shape == (2, N_CLS, 15, 16), out.shape
    assert jnp.allclose(out, ref, rtol=2e-3, atol=5e-4), float(jnp.max(jnp.abs(out - ref)))
    print("KERNEL_OK")
</pallas_src>

<mosaic_0001>
module attributes {stable_mosaic.version = 11 : i64} {
  func.func @dinoclip_fused_kernel(%arg0: i32, %arg1: i32, %arg2: memref<1x256x32xbf16, #tpu.memory_space<vmem>>, %arg3: memref<1x40x256xbf16, #tpu.memory_space<vmem>>, %arg4: memref<8x32xbf16, #tpu.memory_space<vmem>>, %arg5: memref<1x8x256xf32, #tpu.memory_space<vmem>>) attributes {dimension_semantics = [#tpu.dimension_semantics<parallel>, #tpu.dimension_semantics<parallel>], iteration_bounds = array<i64: 2, 1>, scalar_prefetch = 0 : i64, scratch_operands = 0 : i64, tpu.core_type = #tpu.core_type<tc>, window_params = [{transform_indices = @transform_0, window_bounds = array<i64: 1, 256, 32>}, {transform_indices = @transform_1, window_bounds = array<i64: 1, 40, 256>}, {pipeline_mode = #tpu.pipeline_mode<synchronous>, transform_indices = @transform_2, window_bounds = array<i64: 8, 32>}, {transform_indices = @transform_3, window_bounds = array<i64: 1, 8, 256>}]} {
    %c0 = arith.constant 0 : index
    %c0_0 = arith.constant 0 : index
    %c0_1 = arith.constant 0 : index
    %0 = vector.load %arg2[%c0, %c0_0, %c0_1] : memref<1x256x32xbf16, #tpu.memory_space<vmem>>, vector<1x256x32xbf16>
    %1 = vector.shape_cast %0 : vector<1x256x32xbf16> to vector<256x32xbf16>
    %c256_i32 = arith.constant 256 : i32
    %2 = arith.muli %arg1, %c256_i32 : i32
    %3 = tpu.assume_multiple %2, 128 : i32
    %c0_2 = arith.constant 0 : index
    %4 = arith.index_cast %3 : i32 to index
    %c0_3 = arith.constant 0 : index
    %5 = vector.load %arg2[%c0_2, %4, %c0_3] : memref<1x256x32xbf16, #tpu.memory_space<vmem>>, vector<1x256x32xbf16>
    %6 = vector.shape_cast %5 : vector<1x256x32xbf16> to vector<256x32xbf16>
    %cst = arith.constant dense<0.000000e+00> : vector<256x256xf32>
    %7 = tpu.matmul %1, %6, %cst {dimension_numbers = #tpu.dot_dimension_numbers<[1], [1], [0], [0], [0, 0, 1, 0], [], []>} : vector<256x32xbf16>, vector<256x32xbf16>, vector<256x256xf32> -> vector<256x256xf32>
    %8 = arith.truncf %7 : vector<256x256xf32> to vector<256x256xbf16>
    %cst_4 = arith.constant 2.001950e-01 : bf16
    %9 = vector.broadcast %cst_4 : bf16 to vector<256x256xbf16>
    %10 = arith.cmpf olt, %8, %9 : vector<256x256xbf16>
    %cst_5 = arith.constant 0.000000e+00 : f32
    %11 = arith.truncf %cst_5 : f32 to bf16
    %12 = vector.broadcast %11 : bf16 to vector<256x256xbf16>
    %13 = arith.select %10, %12, %8 : vector<256x256xi1>, vector<256x256xbf16>
    %c0_6 = arith.constant 0 : index
    %c0_7 = arith.constant 0 : index
    %c0_8 = arith.constant 0 : index
    %14 = vector.load %arg3[%c0_6, %c0_7, %c0_8] : memref<1x40x256xbf16, #tpu.memory_space<vmem>>, vector<1x40x256xbf16>
    %15 = vector.shape_cast %14 : vector<1x40x256xbf16> to vector<40x256xbf16>
    %cst_9 = arith.constant dense<0.000000e+00> : vector<40x256xf32>
    %16 = tpu.matmul %15, %13, %cst_9 {dimension_numbers = #tpu.dot_dimension_numbers<[1], [0], [0], [1], [0, 0, 1, 1], [], []>} : vector<40x256xbf16>, vector<256x256xbf16>, vector<40x256xf32> -> vector<40x256xf32>
    %17 = vector.extract_strided_slice %16 {offsets = [0, 0], sizes = [32, 256], strides = [1, 1]} : vector<40x256xf32> to vector<32x256xf32>
    %18 = vector.extract_strided_slice %16 {offsets = [32, 0], sizes = [1, 256], strides = [1, 1]} : vector<40x256xf32> to vector<1x256xf32>
    %cst_10 = arith.constant 9.99999997E-7 : f32
    %19 = vector.broadcast %cst_10 : f32 to vector<1x256xf32>
    %20 = arith.addf %18, %19 : vector<1x256xf32>
    %21 = tpu.reciprocal %20 {approx = true} : vector<1x256xf32> -> vector<1x256xf32>
    %22 = vector.broadcast %21 : vector<1x256xf32> to vector<32x256xf32>
    %23 = arith.mulf %17, %22 : vector<32x256xf32>
    %24 = arith.mulf %23, %23 : vector<32x256xf32>
    %cst_11 = arith.constant dense<0.000000e+00> : vector<256xf32>
    %25 = vector.multi_reduction <add>, %24, %cst_11 [0] : vector<32x256xf32> to vector<256xf32>
    %26 = vector.shape_cast %25 : vector<256xf32> to vector<1x256xf32>
    %cst_12 = arith.constant 9.99999996E-13 : f32
    %27 = vector.broadcast %cst_12 : f32 to vector<1x256xf32>
    %28 = arith.addf %26, %27 : vector<1x256xf32>
    %29 = math.rsqrt %28 : vector<1x256xf32>
    %30 = vector.broadcast %29 : vector<1x256xf32> to vector<32x256xf32>
    %31 = arith.mulf %23, %30 : vector<32x256xf32>
    %c0_13 = arith.constant 0 : index
    %c0_14 = arith.constant 0 : index
    %32 = vector.load %arg4[%c0_13, %c0_14] : memref<8x32xbf16, #tpu.memory_space<vmem>>, vector<8x32xbf16>
    %33 = arith.truncf %31 : vector<32x256xf32> to vector<32x256xbf16>
    %cst_15 = arith.constant dense<0.000000e+00> : vector<8x256xf32>
    %34 = tpu.matmul %32, %33, %cst_15 {dimension_numbers = #tpu.dot_dimension_numbers<[1], [0], [0], [1], [0, 0, 1, 1], [], []>} : vector<8x32xbf16>, vector<32x256xbf16>, vector<8x256xf32> -> vector<8x256xf32>
    %c0_16 = arith.constant 0 : index
    %c0_17 = arith.constant 0 : index
    %c0_18 = arith.constant 0 : index
    %35 = vector.load %arg5[%c0_16, %c0_17, %c0_18] : memref<1x8x256xf32, #tpu.memory_space<vmem>>, vector<1x8x256xf32>
    %36 = vector.shape_cast %35 : vector<1x8x256xf32> to vector<8x256xf32>
    %37 = vector.shape_cast %34 : vector<8x256xf32> to vector<1x8x256xf32>
    tpu.vector_store %arg5[%c0_16, %c0_17, %c0_18], %37 {strides = array<i32>} : memref<1x8x256xf32, #tpu.memory_space<vmem>>, vector<1x8x256xf32>,
    return
  }
  func.func @transform_0(%arg0: i32, %arg1: i32) -> (i32, i32, i32) {
    %c0_i32 = arith.constant 0 : i32
    %c0_i32_0 = arith.constant 0 : i32
    %c0_i32_1 = arith.constant 0 : i32
    return %arg0, %c0_i32, %c0_i32_0 : i32, i32, i32
  }
  func.func @transform_1(%arg0: i32, %arg1: i32) -> (i32, i32, i32) {
    %c0_i32 = arith.constant 0 : i32
    %c0_i32_0 = arith.constant 0 : i32
    %c0_i32_1 = arith.constant 0 : i32
    return %arg0, %c0_i32, %c0_i32_0 : i32, i32, i32
  }
  func.func @transform_2(%arg0: i32, %arg1: i32) -> (i32, i32) {
    %c0_i32 = arith.constant 0 : i32
    %c0_i32_0 = arith.constant 0 : i32
    %c0_i32_1 = arith.constant 0 : i32
    return %c0_i32, %c0_i32_0 : i32, i32
  }
  func.func @transform_3(%arg0: i32, %arg1: i32) -> (i32, i32, i32) {
    %c0_i32 = arith.constant 0 : i32
    %c0_i32_0 = arith.constant 0 : i32
    return %arg0, %c0_i32, %arg1 : i32, i32, i32
  }
}

</mosaic_0001>

<llo_original>
// kernel: tpu_custom_call.1
$region0: #{tpu_custom_call.1}
  #allocation0 [shape = 'u32[]', space=smem, size = 0x4, offset = 0x4, fixed_abs, tag = 'smem constant byte address 0x4 - core index']
  #allocation1 [shape = 'u32[144,128]{1,0:T(1,128)}', space=vmem, size = 0x12000, scoped, tag = 'internal scratch']
  %s0 = inlined_call_operand.vmem [shape: bf16[2,256,32], index: 0, kind: input, shape index: {}]
  %s1 = inlined_call_operand.vmem [shape: bf16[2,40,256], index: 1, kind: input, shape index: {}]
  %s2 = inlined_call_operand.vmem [shape: bf16[8,32], index: 2, kind: input, shape index: {}]
  %s3 = inlined_call_operand.hbm [shape: f32[2,8,256], index: 3, kind: output, shape index: {}]
  %s4 = sld [smem:[#allocation0]]
  $region45: #{tpu_custom_call.1} parent=0
    _
  %s6 = ssub.s32 1, %s4
  %s7 = scalar_select 0, %s6, %s4
  $region1: #{tpu_custom_call.1} parent=0
    #allocation2 [shape = 'u8[16384]{0}', space=vmem, size = 0x4000, scoped, tag = 'output window, operand 0']
    #allocation3 [shape = 's32[2]{0}', space=sflag, size = 0x8, scoped, tag = 'scoped memory for tpu_custom_call.1']
    %8 = vsyncpa [#allocation3], 0
    %s9 = scalar_lea.sflag [#allocation3], 1
    %10 = vsyncpa %s9, 0
    loop: start=0, step=1, limit=4
    $region2: #{tpu_custom_call.1} parent=1 // loop_pre_header
      _
    $region3: #{tpu_custom_call.1} parent=1 // loop_header
      %s12 = sphi 0, %s16
      %p13 = scmp.ge.s32.totalorder %s12, 4
      %s19 = sphi 0, %s31
      %s20 = sphi 0, %s27
      %s21 = sphi 0, %s19
      %s22 = sphi 0, %s20
      %s23 = sphi 0, %s21
      %s24 = sphi 0, %s22
      %s34 = sphi 0, %s36
      %s37 = sphi 0, %s34
      %s38 = sphi 0, %s37
      %s54 = sphi 0, %s38
      %s60 = sphi 0, %s62
      %s63 = sphi 0, %s60
      %s64 = sphi 0, %s63
      %s80 = sphi 0, %s64
      %s84 = sphi 0, %s84
      %s86 = sphi 0, %s84
      %s87 = sphi 0, %s86
      %s101 = sphi 0, %s87
      %s109 = sphi 0, %s111
      %s112 = sphi 0, %s109
      %s113 = sphi 0, %s112
      %s129 = sphi 0, %s113
    $region4: #{tpu_custom_call.1} parent=1 // loop_header_branch
      %15 = sbr.rel (%p13) target = $region8
    $region5: #{tpu_custom_call.1} parent=1 // loop_body
      %s17 = ssub.s32 %s12, 1
      %s18 = ssub.s32 %s12, 2
      %s25 = sadd.s32 1, %s20
      %p26 = scmp.ge.s32.totalorder %s25, 1
      %s27 = scalar_select %p26, 0, %s25
      %s28 = sadd.s32 1, %s19
      %s29 = scalar_select %p26, %s28, %s19
      %p30 = scmp.ge.s32.totalorder %s29, 2
      %s31 = scalar_select %p30, 0, %s29
      %s32 = ssub.s32 %s19, %s31
      %p33 = scmp.eq.s32.totalorder %s32, 0
      %s35 = sadd.s32 %s34, 1
      %s36 = scalar_select %p33, %s34, %s35
      %p39 = pneg %p33
      %p40 = scmp.eq.s32.totalorder %s12, 1
      %p41 = por %p39, %p40
      %p42 = scmp.ne.s32.totalorder %s34, %s37
      %p43 = scmp.eq.s32.totalorder %s12, 0
      %p44 = por %p42, %p43
      %p45 = scmp.ne.s32.totalorder %s34, %s37
      %p46 = scmp.eq.s32.totalorder %s17, 1
      %p47 = por %p45, %p46
      %p48 = scmp.ne.s32.totalorder %s37, %s38
      %p49 = scmp.eq.s32.totalorder %s17, 0
      %p50 = por %p48, %p49
      %p51 = scmp.ne.s32.totalorder %s37, %s38
      %p52 = scmp.eq.s32.totalorder %s18, 1
      %p53 = por %p51, %p52
      %p55 = scmp.ne.s32.totalorder %s38, %s54
      %p56 = scmp.eq.s32.totalorder %s18, 0
      %p57 = por %p55, %p56
      %s58 = ssub.s32 %s19, %s31
      %p59 = scmp.eq.s32.totalorder %s58, 0
      %s61 = sadd.s32 %s60, 1
      %s62 = scalar_select %p59, %s60, %s61
      %p65 = pneg %p59
      %p66 = scmp.eq.s32.totalorder %s12, 1
      %p67 = por %p65, %p66
      %p68 = scmp.ne.s32.totalorder %s60, %s63
      %p69 = scmp.eq.s32.totalorder %s12, 0
      %p70 = por %p68, %p69
      %p71 = scmp.ne.s32.totalorder %s60, %s63
      %p72 = scmp.eq.s32.totalorder %s17, 1
      %p73 = por %p71, %p72
      %p74 = scmp.ne.s32.totalorder %s63, %s64
      %p75 = scmp.eq.s32.totalorder %s17, 0
      %p76 = por %p74, %p75
      %p77 = scmp.ne.s32.totalorder %s63, %s64
      %p78 = scmp.eq.s32.totalorder %s18, 1
      %p79 = por %p77, %p78
      %p81 = scmp.ne.s32.totalorder %s64, %s80
      %p82 = scmp.eq.s32.totalorder %s18, 0
      %p83 = por %p81, %p82
      %s85 = sadd.s32 %s84, 1
      %p88 = scmp.eq.s32.totalorder %s12, 1
      %p89 = scmp.ne.s32.totalorder %s84, %s86
      %p90 = scmp.eq.s32.totalorder %s12, 0
      %p91 = por %p89, %p90
      %p92 = scmp.ne.s32.totalorder %s84, %s86
      %p93 = scmp.eq.s32.totalorder %s17, 1
      %p94 = por %p92, %p93
      %p95 = scmp.ne.s32.totalorder %s86, %s87
      %p96 = scmp.eq.s32.totalorder %s17, 0
      %p97 = por %p95, %p96
      %p98 = scmp.ne.s32.totalorder %s86, %s87
      %p99 = scmp.eq.s32.totalorder %s18, 1
      %p100 = por %p98, %p99
      %p102 = scmp.ne.s32.totalorder %s87, %s101
      %p103 = scmp.eq.s32.totalorder %s18, 0
      %p104 = por %p102, %p103
      %s105 = ssub.s32 %s19, %s31
      %s106 = ssub.s32 %s20, %s27
      %s107 = sor.u32 %s105, %s106
      %p108 = scmp.eq.s32.totalorder %s107, 0
      %s110 = sadd.s32 %s109, 1
      %s111 = scalar_select %p108, %s109, %s110
      %p114 = pneg %p108
      %p115 = scmp.eq.s32.totalorder %s12, 1
      %p116 = por %p114, %p115
      %p117 = scmp.ne.s32.totalorder %s109, %s112
      %p118 = scmp.eq.s32.totalorder %s12, 0
      %p119 = por %p117, %p118
      %p120 = scmp.ne.s32.totalorder %s109, %s112
      %p121 = scmp.eq.s32.totalorder %s17, 1
      %p122 = por %p120, %p121
      %p123 = scmp.ne.s32.totalorder %s112, %s113
      %p124 = scmp.eq.s32.totalorder %s17, 0
      %p125 = por %p123, %p124
      %p126 = scmp.ne.s32.totalorder %s112, %s113
      %p127 = scmp.eq.s32.totalorder %s18, 1
      %p128 = por %p126, %p127
      %p130 = scmp.ne.s32.totalorder %s113, %s129
      %p131 = scmp.eq.s32.totalorder %s18, 0
      %p132 = por %p130, %p131
      %p133 = scmp.le.s32.totalorder 1, %s12
      %p134 = scmp.lt.s32.totalorder %s12, 3
      %p135 = pnand %p133, %p134
      %p136 = pneg %p135
      // Predicated region
      $region9: #{tpu_custom_call.1} parent=5 // pred_check
        _
      $region10: #{tpu_custom_call.1} parent=5 // pred_check_branch
        %138 = sbr.rel (%p135) target = $region12
      $region11: #{tpu_custom_call.1} parent=5 // pred_region
        %s139 = ssub.s32 %s12, 1
        // Predicated region
        $region13: #{tpu_custom_call.1} parent=11 // pred_check
          %p140 = pneg %p97
        $region14: #{tpu_custom_call.1} parent=11 // pred_check_branch
          %142 = sbr.rel (%p140) target = $region16
        $region15: #{tpu_custom_call.1} parent=11 // pred_region
          _
        $region16: #{tpu_custom_call.1} parent=11 // pred_fallthru
          _
      $region12: #{tpu_custom_call.1} parent=5 // pred_fallthru
        _
      %p143 = scmp.lt.s32.totalorder %s12, 2
      // Predicated region
      $region17: #{tpu_custom_call.1} parent=5 // pred_check
        %p144 = pneg %p143
      $region18: #{tpu_custom_call.1} parent=5 // pred_check_branch
        %146 = sbr.rel (%p144) target = $region20
      $region19: #{tpu_custom_call.1} parent=5 // pred_region
        // Predicated region
        $region21: #{tpu_custom_call.1} parent=19 // pred_check
          %p147 = pneg %p44
        $region22: #{tpu_custom_call.1} parent=19 // pred_check_branch
          %149 = sbr.rel (%p147) target = $region24
        $region23: #{tpu_custom_call.1} parent=19 // pred_region
          %p150 = scmp.lt.s32.totalorder %s19, 1
          %s151 = scalar_select %p150, %s19, 1
          %s152 = smul.addr %s151, 32
          %s153 = smul.addr %s152, 4
          %s154 = scalar_lea.vmem %s0, %s153
        $region24: #{tpu_custom_call.1} parent=19 // pred_fallthru
          _
        // Predicated region
        $region25: #{tpu_custom_call.1} parent=19 // pred_check
          %p155 = pneg %p70
        $region26: #{tpu_custom_call.1} parent=19 // pred_check_branch
          %157 = sbr.rel (%p155) target = $region28
        $region27: #{tpu_custom_call.1} parent=19 // pred_region
          %p158 = scmp.lt.s32.totalorder %s19, 1
          %s159 = scalar_select %p158, %s19, 1
          %s160 = smul.addr %s159, 10
          %s161 = smul.addr %s160, 4
          %s162 = scalar_lea.vmem %s1, %s161
        $region28: #{tpu_custom_call.1} parent=19 // pred_fallthru
          _
      $region20: #{tpu_custom_call.1} parent=5 // pred_fallthru
        _
      %p163 = scmp.le.s32.totalorder 1, %s12
      %p164 = scmp.lt.s32.totalorder %s12, 3
      %p165 = pnand %p163, %p164
      %p166 = pneg %p165
      // Predicated region
      $region29: #{tpu_custom_call.1} parent=5 // pred_check
        _
      $region30: #{tpu_custom_call.1} parent=5 // pred_check_branch
        %168 = sbr.rel (%p165) target = $region32
      $region31: #{tpu_custom_call.1} parent=5 // pred_region
        %s169 = ssub.s32 %s12, 1
        %p170 = scmp.lt.s32.totalorder %s21, 1
        %s171 = scalar_select %p170, %s21, 1
        %s172 = smul.addr %s171, 32
        %s173 = smul.addr %s172, 4
        %s174 = scalar_lea.vmem %s0, %s173
        %p175 = pneg %p50
        %p176 = pneg %p47
        %p177 = scmp.lt.s32.totalorder %s21, 1
        %s178 = scalar_select %p177, %s21, 1
        %s179 = smul.addr %s178, 10
        %s180 = smul.addr %s179, 4
        %s181 = scalar_lea.vmem %s1, %s180
        %p182 = pneg %p76
        %p183 = pneg %p73
        %p184 = pneg %p97
        %p185 = pneg %p94
        %p186 = pneg %p125
        %p187 = pneg %p122
        %s188 = sand.u32 %s112, 1
        %s189 = scalar_lea.sflag [#allocation3], %s188
        %s190 = sand.u32 %s112, 1
        %s191 = smul.addr %s190, 16
        %s192 = scalar_lea.vmem [#allocation2], %s191
        %p193 = scmp.lt.s32.totalorder %s21, 1
        %s194 = scalar_select %p193, %s21, 1
        %s195 = smul.addr %s194, 32
        %s196 = smul.addr %s195, 4
        %s197 = scalar_lea.vmem %s0, %s196
        %p198 = scmp.lt.s32.totalorder %s21, 1
        %s199 = scalar_select %p198, %s21, 1
        %s200 = smul.addr %s199, 10
        %s201 = smul.addr %s200, 4
        %s202 = scalar_lea.vmem %s1, %s201
        %s203 = smul.u32 2, %s22
        %v206 = vld [vmem:[%s197] sm:$0xf]
        %v207 = vld [vmem:[%s197 + $0x4] sm:$0xf]
        %v208 = vld [vmem:[%s197 + $0x8] sm:$0xf]
        %v209 = vld [vmem:[%s197 + $0xc] sm:$0xf]
        %v210 = vld [vmem:[%s197 + $0x10] sm:$0xf]
        %v211 = vld [vmem:[%s197 + $0x14] sm:$0xf]
        %v212 = vld [vmem:[%s197 + $0x18] sm:$0xf]
        %v213 = vld [vmem:[%s197 + $0x1c] sm:$0xf]
        %v214 = vld [vmem:[%s197 + $0x20] sm:$0xf]
        %v215 = vld [vmem:[%s197 + $0x24] sm:$0xf]
        %v216 = vld [vmem:[%s197 + $0x28] sm:$0xf]
        %v217 = vld [vmem:[%s197 + $0x2c] sm:$0xf]
        %v218 = vld [vmem:[%s197 + $0x30] sm:$0xf]
        %v219 = vld [vmem:[%s197 + $0x34] sm:$0xf]
        %v220 = vld [vmem:[%s197 + $0x38] sm:$0xf]
        %v221 = vld [vmem:[%s197 + $0x3c] sm:$0xf]
        %v222 = vld [vmem:[%s197 + $0x40] sm:$0xf]
        %v223 = vld [vmem:[%s197 + $0x44] sm:$0xf]
        %v224 = vld [vmem:[%s197 + $0x48] sm:$0xf]
        %v225 = vld [vmem:[%s197 + $0x4c] sm:$0xf]
        %v226 = vld [vmem:[%s197 + $0x50] sm:$0xf]
        %v227 = vld [vmem:[%s197 + $0x54] sm:$0xf]
        %v228 = vld [vmem:[%s197 + $0x58] sm:$0xf]
        %v229 = vld [vmem:[%s197 + $0x5c] sm:$0xf]
        %v230 = vld [vmem:[%s197 + $0x60] sm:$0xf]
        %v231 = vld [vmem:[%s197 + $0x64] sm:$0xf]
        %v232 = vld [vmem:[%s197 + $0x68] sm:$0xf]
        %v233 = vld [vmem:[%s197 + $0x6c] sm:$0xf]
        %v234 = vld [vmem:[%s197 + $0x70] sm:$0xf]
        %v235 = vld [vmem:[%s197 + $0x74] sm:$0xf]
        %v236 = vld [vmem:[%s197 + $0x78] sm:$0xf]
        %v237 = vld [vmem:[%s197 + $0x7c] sm:$0xf]
        %s238 = smul.u32 %s22, 256
        %s239 = sshra.s32 %s238, 3
        %s240 = sand.u32 %s238, 7
        %s241 = smul.addr %s239, 4
        %s242 = scalar_lea.vmem %s197, %s241
        %v243 = vld [vmem:[%s242] sm:$0xf]
        %v244 = vld [vmem:[%s242 + $0x4] sm:$0xf]
        %v245 = vld [vmem:[%s242 + $0x8] sm:$0xf]
        %v246 = vld [vmem:[%s242 + $0xc] sm:$0xf]
        %v247 = vld [vmem:[%s242 + $0x10] sm:$0xf]
        %v248 = vld [vmem:[%s242 + $0x14] sm:$0xf]
        %v249 = vld [vmem:[%s242 + $0x18] sm:$0xf]
        %v250 = vld [vmem:[%s242 + $0x1c] sm:$0xf]
        %v251 = vld [vmem:[%s242 + $0x20] sm:$0xf]
        %v252 = vld [vmem:[%s242 + $0x24] sm:$0xf]
        %v253 = vld [vmem:[%s242 + $0x28] sm:$0xf]
        %v254 = vld [vmem:[%s242 + $0x2c] sm:$0xf]
        %v255 = vld [vmem:[%s242 + $0x30] sm:$0xf]
        %v256 = vld [vmem:[%s242 + $0x34] sm:$0xf]
        %v257 = vld [vmem:[%s242 + $0x38] sm:$0xf]
        %v258 = vld [vmem:[%s242 + $0x3c] sm:$0xf]
        %v259 = vld [vmem:[%s242 + $0x40] sm:$0xf]
        %v260 = vld [vmem:[%s242 + $0x44] sm:$0xf]
        %v261 = vld [vmem:[%s242 + $0x48] sm:$0xf]
        %v262 = vld [vmem:[%s242 + $0x4c] sm:$0xf]
        %v263 = vld [vmem:[%s242 + $0x50] sm:$0xf]
        %v264 = vld [vmem:[%s242 + $0x54] sm:$0xf]
        %v265 = vld [vmem:[%s242 + $0x58] sm:$0xf]
        %v266 = vld [vmem:[%s242 + $0x5c] sm:$0xf]
        %v267 = vld [vmem:[%s242 + $0x60] sm:$0xf]
        %v268 = vld [vmem:[%s242 + $0x64] sm:$0xf]
        %v269 = vld [vmem:[%s242 + $0x68] sm:$0xf]
        %v270 = vld [vmem:[%s242 + $0x6c] sm:$0xf]
        %v271 = vld [vmem:[%s242 + $0x70] sm:$0xf]
        %v272 = vld [vmem:[%s242 + $0x74] sm:$0xf]
        %v273 = vld [vmem:[%s242 + $0x78] sm:$0xf]
        %v274 = vld [vmem:[%s242 + $0x7c] sm:$0xf]
        %v307 = vunpack.c.l.b16 %v206
        %v308 = vunpack.c.l.b16 %v207
        %v309 = vunpack.c.l.b16 %v208
        %v310 = vunpack.c.l.b16 %v209
        %v311 = vunpack.c.l.b16 %v210
        %v312 = vunpack.c.l.b16 %v211
        %v313 = vunpack.c.l.b16 %v212
        %v314 = vunpack.c.l.b16 %v213
        %v315 = vunpack.c.l.b16 %v214
        %v316 = vunpack.c.l.b16 %v215
        %v317 = vunpack.c.l.b16 %v216
        %v318 = vunpack.c.l.b16 %v217
        %v319 = vunpack.c.l.b16 %v218
        %v320 = vunpack.c.l.b16 %v219
        %v321 = vunpack.c.l.b16 %v220
        %v322 = vunpack.c.l.b16 %v221
        %v323 = vunpack.c.l.b16 %v222
        %v324 = vunpack.c.l.b16 %v223
        %v325 = vunpack.c.l.b16 %v224
        %v326 = vunpack.c.l.b16 %v225
        %v327 = vunpack.c.l.b16 %v226
        %v328 = vunpack.c.l.b16 %v227
        %v329 = vunpack.c.l.b16 %v228
        %v330 = vunpack.c.l.b16 %v229
        %v331 = vunpack.c.l.b16 %v230
        %v332 = vunpack.c.l.b16 %v231
        %v333 = vunpack.c.l.b16 %v232
        %v334 = vunpack.c.l.b16 %v233
        %v335 = vunpack.c.l.b16 %v234
        %v336 = vunpack.c.l.b16 %v235
        %v337 = vunpack.c.l.b16 %v236
        %v338 = vunpack.c.l.b16 %v237
        %v339 = vpack.c.b16 %v308, %v307
        %v340 = vpack.c.b16 %v310, %v309
        %v341 = vpack.c.b16 %v312, %v311
        %v342 = vpack.c.b16 %v314, %v313
        %v343 = vpack.c.b16 %v316, %v315
        %v344 = vpack.c.b16 %v318, %v317
        %v345 = vpack.c.b16 %v320, %v319
        %v346 = vpack.c.b16 %v322, %v321
        %v347 = vpack.c.b16 %v324, %v323
        %v348 = vpack.c.b16 %v326, %v325
        %v349 = vpack.c.b16 %v328, %v327
        %v350 = vpack.c.b16 %v330, %v329
        %v351 = vpack.c.b16 %v332, %v331
        %v352 = vpack.c.b16 %v334, %v333
        %v353 = vpack.c.b16 %v336, %v335
        %v354 = vpack.c.b16 %v338, %v337
        %v387 = vunpack.c.l.b16 %v243
        %v388 = vunpack.c.l.b16 %v244
        %v389 = vunpack.c.l.b16 %v245
        %v390 = vunpack.c.l.b16 %v246
        %v391 = vunpack.c.l.b16 %v247
        %v392 = vunpack.c.l.b16 %v248
        %v393 = vunpack.c.l.b16 %v249
        %v394 = vunpack.c.l.b16 %v250
        %v395 = vunpack.c.l.b16 %v251
        %v396 = vunpack.c.l.b16 %v252
        %v397 = vunpack.c.l.b16 %v253
        %v398 = vunpack.c.l.b16 %v254
        %v399 = vunpack.c.l.b16 %v255
        %v400 = vunpack.c.l.b16 %v256
        %v401 = vunpack.c.l.b16 %v257
        %v402 = vunpack.c.l.b16 %v258
        %v403 = vunpack.c.l.b16 %v259
        %v404 = vunpack.c.l.b16 %v260
        %v405 = vunpack.c.l.b16 %v261
        %v406 = vunpack.c.l.b16 %v262
        %v407 = vunpack.c.l.b16 %v263
        %v408 = vunpack.c.l.b16 %v264
        %v409 = vunpack.c.l.b16 %v265
        %v410 = vunpack.c.l.b16 %v266
        %v411 = vunpack.c.l.b16 %v267
        %v412 = vunpack.c.l.b16 %v268
        %v413 = vunpack.c.l.b16 %v269
        %v414 = vunpack.c.l.b16 %v270
        %v415 = vunpack.c.l.b16 %v271
        %v416 = vunpack.c.l.b16 %v272
        %v417 = vunpack.c.l.b16 %v273
        %v418 = vunpack.c.l.b16 %v274
        %v419 = vpack.c.b16 %v388, %v387
        %v420 = vpack.c.b16 %v390, %v389
        %v421 = vpack.c.b16 %v392, %v391
        %v422 = vpack.c.b16 %v394, %v393
        %v423 = vpack.c.b16 %v396, %v395
        %v424 = vpack.c.b16 %v398, %v397
        %v425 = vpack.c.b16 %v400, %v399
        %v426 = vpack.c.b16 %v402, %v401
        %v427 = vpack.c.b16 %v404, %v403
        %v428 = vpack.c.b16 %v406, %v405
        %v429 = vpack.c.b16 %v408, %v407
        %v430 = vpack.c.b16 %v410, %v409
        %v431 = vpack.c.b16 %v412, %v411
        %v432 = vpack.c.b16 %v414, %v413
        %v433 = vpack.c.b16 %v416, %v415
        %v434 = vpack.c.b16 %v418, %v417
        %vm435 = vcmask 261120
        %v437 = vsel %vm435, %v339, 0
        %v440 = vsel %vm435, %v340, 0
        %v443 = vsel %vm435, %v341, 0
        %v446 = vsel %vm435, %v342, 0
        %v449 = vsel %vm435, %v343, 0
        %v452 = vsel %vm435, %v344, 0
        %v455 = vsel %vm435, %v345, 0
        %v458 = vsel %vm435, %v346, 0
        %v461 = vsel %vm435, %v347, 0
        %v464 = vsel %vm435, %v348, 0
        %v467 = vsel %vm435, %v349, 0
        %v470 = vsel %vm435, %v350, 0
        %v473 = vsel %vm435, %v351, 0
        %v476 = vsel %vm435, %v352, 0
        %v479 = vsel %vm435, %v353, 0
        %v482 = vsel %vm435, %v354, 0
        %v485 = vsel %vm435, %v419, 0
        %v488 = vsel %vm435, %v420, 0
        %v491 = vsel %vm435, %v421, 0
        %v494 = vsel %vm435, %v422, 0
        %v497 = vsel %vm435, %v423, 0
        %v500 = vsel %vm435, %v424, 0
        %v503 = vsel %vm435, %v425, 0
        %v506 = vsel %vm435, %v426, 0
        %v509 = vsel %vm435, %v427, 0
        %v512 = vsel %vm435, %v428, 0
        %v515 = vsel %vm435, %v429, 0
        %v518 = vsel %vm435, %v430, 0
        %v521 = vsel %vm435, %v431, 0
        %v524 = vsel %vm435, %v432, 0
        %v527 = vsel %vm435, %v433, 0
        %v530 = vsel %vm435, %v434, 0
        %532 = vmatprep.subr.bf16.mxu0 0
        %533 = vmatpush1.bf16.xpose.msra.mxu0 %v485
        %534 = vmatprep.subr.bf16.mxu0 0
        %535 = vmatpush1.bf16.xpose.msra.mxu0 %v488
        %536 = vmatprep.subr.bf16.mxu0 0
        %537 = vmatpush1.bf16.xpose.msra.mxu0 %v491
        %538 = vmatprep.subr.bf16.mxu0 0
        %539 = vmatpush1.bf16.xpose.msra.mxu0 %v494
        %540 = vmatprep.subr.bf16.mxu0 0
        %541 = vmatpush1.bf16.xpose.msra.mxu0 %v497
        %542 = vmatprep.subr.bf16.mxu0 0
        %543 = vmatpush1.bf16.xpose.msra.mxu0 %v500
        %544 = vmatprep.subr.bf16.mxu0 0
        %545 = vmatpush1.bf16.xpose.msra.mxu0 %v503
        %546 = vmatprep.subr.bf16.mxu0 0
        %547 = vmatpush1.bf16.xpose.msra.mxu0 %v506
        %548 = vmatprep.subr.bf16.mxu0 0
        %549 = vmatpush1.bf16.xpose.msra.mxu0 %v509
        %550 = vmatprep.subr.bf16.mxu0 0
        %551 = vmatpush1.bf16.xpose.msra.mxu0 %v512
        %552 = vmatprep.subr.bf16.mxu0 0
        %553 = vmatpush1.bf16.xpose.msra.mxu0 %v515
        %554 = vmatprep.subr.bf16.mxu0 0
        %555 = vmatpush1.bf16.xpose.msra.mxu0 %v518
        %556 = vmatprep.subr.bf16.mxu0 0
        %557 = vmatpush1.bf16.xpose.msra.mxu0 %v521
        %558 = vmatprep.subr.bf16.mxu0 0
        %559 = vmatpush1.bf16.xpose.msra.mxu0 %v524
        %560 = vmatprep.subr.bf16.mxu0 0
        %561 = vmatpush1.bf16.xpose.msra.mxu0 %v527
        %562 = vmatprep.subr.bf16.mxu0 0
        %563 = vmatpush1.bf16.xpose.msra.mxu0 %v530
        %564 = vmatprep.mubr.bf16.mxu0 0
        %565 = vmatmul.mubr.bf16.gmra.mrb[0].mxu0 %v437
        %v566 = vpop.f32.mrb[0].mxu0
        %v567 = vadd.f32 0.0, %v566
        %v568 = vpop.f32.mrb[0].mxu0
        %v569 = vadd.f32 0.0, %v568
        %v570 = vpop.f32.mrb[0].mxu0
        %v571 = vadd.f32 0.0, %v570
        %v572 = vpop.f32.mrb[0].mxu0
        %v573 = vadd.f32 0.0, %v572
        %574 = vmatprep.mubr.bf16.mxu0 0
        %575 = vmatmul.mubr.bf16.gmra.mrb[0].mxu0 %v440
        %v576 = vpop.f32.mrb[0].mxu0
        %v577 = vadd.f32 0.0, %v576
        %v578 = vpop.f32.mrb[0].mxu0
        %v579 = vadd.f32 0.0, %v578
        %v580 = vpop.f32.mrb[0].mxu0
        %v581 = vadd.f32 0.0, %v580
        %v582 = vpop.f32.mrb[0].mxu0
        %v583 = vadd.f32 0.0, %v582
        %584 = vmatprep.mubr.bf16.mxu0 0
        %585 = vmatmul.mubr.bf16.gmra.mrb[0].mxu0 %v443
        %v586 = vpop.f32.mrb[0].mxu0
        %v587 = vadd.f32 0.0, %v586
        %v588 = vpop.f32.mrb[0].mxu0
        %v589 = vadd.f32 0.0, %v588
        %v590 = vpop.f32.mrb[0].mxu0
        %v591 = vadd.f32 0.0, %v590
        %v592 = vpop.f32.mrb[0].mxu0
        %v593 = vadd.f32 0.0, %v592
        %594 = vmatprep.mubr.bf16.mxu0 0
        %595 = vmatmul.mubr.bf16.gmra.mrb[0].mxu0 %v446
        %v596 = vpop.f32.mrb[0].mxu0
        %v597 = vadd.f32 0.0, %v596
        %v598 = vpop.f32.mrb[0].mxu0
        %v599 = vadd.f32 0.0, %v598
        %v600 = vpop.f32.mrb[0].mxu0
        %v601 = vadd.f32 0.0, %v600
        %v602 = vpop.f32.mrb[0].mxu0
        %v603 = vadd.f32 0.0, %v602
        %604 = vmatprep.mubr.bf16.mxu0 0
        %605 = vmatmul.mubr.bf16.gmra.mrb[0].mxu0 %v449
        %v606 = vpop.f32.mrb[0].mxu0
        %v607 = vadd.f32 0.0, %v606
        %v608 = vpop.f32.mrb[0].mxu0
        %v609 = vadd.f32 0.0, %v608
        %v610 = vpop.f32.mrb[0].mxu0
        %v611 = vadd.f32 0.0, %v610
        %v612 = vpop.f32.mrb[0].mxu0
        %v613 = vadd.f32 0.0, %v612
        %614 = vmatprep.mubr.bf16.mxu0 0
        %615 = vmatmul.mubr.bf16.gmra.mrb[0].mxu0 %v452
        %v616 = vpop.f32.mrb[0].mxu0
        %v617 = vadd.f32 0.0, %v616
        %v618 = vpop.f32.mrb[0].mxu0
        %v619 = vadd.f32 0.0, %v618
        %v620 = vpop.f32.mrb[0].mxu0
        %v621 = vadd.f32 0.0, %v620
        %v622 = vpop.f32.mrb[0].mxu0
        %v623 = vadd.f32 0.0, %v622
        %624 = vmatprep.mubr.bf16.mxu0 0
        %625 = vmatmul.mubr.bf16.gmra.mrb[0].mxu0 %v455
        %v626 = vpop.f32.mrb[0].mxu0
        %v627 = vadd.f32 0.0, %v626
        %v628 = vpop.f32.mrb[0].mxu0
        %v629 = vadd.f32 0.0, %v628
        %v630 = vpop.f32.mrb[0].mxu0
        %v631 = vadd.f32 0.0, %v630
        %v632 = vpop.f32.mrb[0].mxu0
        %v633 = vadd.f32 0.0, %v632
        %634 = vmatprep.mubr.bf16.mxu0 0
        %635 = vmatmul.mubr.bf16.gmra.mrb[0].mxu0 %v458
        %v636 = vpop.f32.mrb[0].mxu0
        %v637 = vadd.f32 0.0, %v636
        %v638 = vpop.f32.mrb[0].mxu0
        %v639 = vadd.f32 0.0, %v638
        %v640 = vpop.f32.mrb[0].mxu0
        %v641 = vadd.f32 0.0, %v640
        %v642 = vpop.f32.mrb[0].mxu0
        %v643 = vadd.f32 0.0, %v642
        %644 = vmatprep.mubr.bf16.mxu0 0
        %645 = vmatmul.mubr.bf16.gmra.mrb[0].mxu0 %v461
        %v646 = vpop.f32.mrb[0].mxu0
        %v647 = vadd.f32 0.0, %v646
        %v648 = vpop.f32.mrb[0].mxu0
        %v649 = vadd.f32 0.0, %v648
        %v650 = vpop.f32.mrb[0].mxu0
        %v651 = vadd.f32 0.0, %v650
        %v652 = vpop.f32.mrb[0].mxu0
        %v653 = vadd.f32 0.0, %v652
        %654 = vmatprep.mubr.bf16.mxu0 0
        %655 = vmatmul.mubr.bf16.gmra.mrb[0].mxu0 %v464
        %v656 = vpop.f32.mrb[0].mxu0
        %v657 = vadd.f32 0.0, %v656
        %v658 = vpop.f32.mrb[0].mxu0
        %v659 = vadd.f32 0.0, %v658
        %v660 = vpop.f32.mrb[0].mxu0
        %v661 = vadd.f32 0.0, %v660
        %v662 = vpop.f32.mrb[0].mxu0
        %v663 = vadd.f32 0.0, %v662
        %664 = vmatprep.mubr.bf16.mxu0 0
        %665 = vmatmul.mubr.bf16.gmra.mrb[0].mxu0 %v467
        %v666 = vpop.f32.mrb[0].mxu0
        %v667 = vadd.f32 0.0, %v666
        %v668 = vpop.f32.mrb[0].mxu0
        %v669 = vadd.f32 0.0, %v668
        %v670 = vpop.f32.mrb[0].mxu0
        %v671 = vadd.f32 0.0, %v670
        %v672 = vpop.f32.mrb[0].mxu0
        %v673 = vadd.f32 0.0, %v672
        %674 = vmatprep.mubr.bf16.mxu0 0
        %675 = vmatmul.mubr.bf16.gmra.mrb[0].mxu0 %v470
        %v676 = vpop.f32.mrb[0].mxu0
        %v677 = vadd.f32 0.0, %v676
        %v678 = vpop.f32.mrb[0].mxu0
        %v679 = vadd.f32 0.0, %v678
        %v680 = vpop.f32.mrb[0].mxu0
        %v681 = vadd.f32 0.0, %v680
        %v682 = vpop.f32.mrb[0].mxu0
        %v683 = vadd.f32 0.0, %v682
        %684 = vmatprep.mubr.bf16.mxu0 0
        %685 = vmatmul.mubr.bf16.gmra.mrb[0].mxu0 %v473
        %v686 = vpop.f32.mrb[0].mxu0
        %v687 = vadd.f32 0.0, %v686
        %v688 = vpop.f32.mrb[0].mxu0
        %v689 = vadd.f32 0.0, %v688
        %v690 = vpop.f32.mrb[0].mxu0
        %v691 = vadd.f32 0.0, %v690
        %v692 = vpop.f32.mrb[0].mxu0
        %v693 = vadd.f32 0.0, %v692
        %694 = vmatprep.mubr.bf16.mxu0 0
        %695 = vmatmul.mubr.bf16.gmra.mrb[0].mxu0 %v476
        %v696 = vpop.f32.mrb[0].mxu0
        %v697 = vadd.f32 0.0, %v696
        %v698 = vpop.f32.mrb[0].mxu0
        %v699 = vadd.f32 0.0, %v698
        %v700 = vpop.f32.mrb[0].mxu0
        %v701 = vadd.f32 0.0, %v700
        %v702 = vpop.f32.mrb[0].mxu0
        %v703 = vadd.f32 0.0, %v702
        %704 = vmatprep.mubr.bf16.mxu0 0
        %705 = vmatmul.mubr.bf16.gmra.mrb[0].mxu0 %v479
        %v706 = vpop.f32.mrb[0].mxu0
        %v707 = vadd.f32 0.0, %v706
        %v708 = vpop.f32.mrb[0].mxu0
        %v709 = vadd.f32 0.0, %v708
        %v710 = vpop.f32.mrb[0].mxu0
        %v711 = vadd.f32 0.0, %v710
        %v712 = vpop.f32.mrb[0].mxu0
        %v713 = vadd.f32 0.0, %v712
        %714 = vmatprep.mubr.bf16.mxu0 0
        %715 = vmatmul.mubr.bf16.gmra.mrb[0].mxu0 %v482
        %v716 = vpop.f32.mrb[0].mxu0
        %v717 = vadd.f32 0.0, %v716
        %v718 = vpop.f32.mrb[0].mxu0
        %v719 = vadd.f32 0.0, %v718
        %v720 = vpop.f32.mrb[0].mxu0
        %v721 = vadd.f32 0.0, %v720
        %v722 = vpop.f32.mrb[0].mxu0
        %v723 = vadd.f32 0.0, %v722
        %724 = vdwg.mxu0
        %v725 = vpack.c.bf16 %v571, %v567
        %v726 = vpack.c.bf16 %v573, %v569
        %v727 = vpack.c.bf16 %v581, %v577
        %v728 = vpack.c.bf16 %v583, %v579
        %v729 = vpack.c.bf16 %v591, %v587
        %v730 = vpack.c.bf16 %v593, %v589
        %v731 = vpack.c.bf16 %v601, %v597
        %v732 = vpack.c.bf16 %v603, %v599
        %v733 = vpack.c.bf16 %v611, %v607
        %v734 = vpack.c.bf16 %v613, %v609
        %v735 = vpack.c.bf16 %v621, %v617
        %v736 = vpack.c.bf16 %v623, %v619
        %v737 = vpack.c.bf16 %v631, %v627
        %v738 = vpack.c.bf16 %v633, %v629
        %v739 = vpack.c.bf16 %v641, %v637
        %v740 = vpack.c.bf16 %v643, %v639
        %v741 = vpack.c.bf16 %v651, %v647
        %v742 = vpack.c.bf16 %v653, %v649
        %v743 = vpack.c.bf16 %v661, %v657
        %v744 = vpack.c.bf16 %v663, %v659
        %v745 = vpack.c.bf16 %v671, %v667
        %v746 = vpack.c.bf16 %v673, %v669
        %v747 = vpack.c.bf16 %v681, %v677
        %v748 = vpack.c.bf16 %v683, %v679
        %v749 = vpack.c.bf16 %v691, %v687
        %v750 = vpack.c.bf16 %v693, %v689
        %v751 = vpack.c.bf16 %v701, %v697
        %v752 = vpack.c.bf16 %v703, %v699
        %v753 = vpack.c.bf16 %v711, %v707
        %v754 = vpack.c.bf16 %v713, %v709
        %v755 = vpack.c.bf16 %v721, %v717
        %v756 = vpack.c.bf16 %v723, %v719
        %vm757 = vcmp.lt.bf16.partialorder %v725, 1045249613
        %vm758 = vcmp.lt.bf16.partialorder %v726, 1045249613
        %vm759 = vcmp.lt.bf16.partialorder %v727, 1045249613
        %vm760 = vcmp.lt.bf16.partialorder %v728, 1045249613
        %vm761 = vcmp.lt.bf16.partialorder %v729, 1045249613
        %vm762 = vcmp.lt.bf16.partialorder %v730, 1045249613
        %vm763 = vcmp.lt.bf16.partialorder %v731, 1045249613
        %vm764 = vcmp.lt.bf16.partialorder %v732, 1045249613
        %vm765 = vcmp.lt.bf16.partialorder %v733, 1045249613
        %vm766 = vcmp.lt.bf16.partialorder %v734, 1045249613
        %vm767 = vcmp.lt.bf16.partialorder %v735, 1045249613
        %vm768 = vcmp.lt.bf16.partialorder %v736, 1045249613
        %vm769 = vcmp.lt.bf16.partialorder %v737, 1045249613
        %vm770 = vcmp.lt.bf16.partialorder %v738, 1045249613
        %vm771 = vcmp.lt.bf16.partialorder %v739, 1045249613
        %vm772 = vcmp.lt.bf16.partialorder %v740, 1045249613
        %vm773 = vcmp.lt.bf16.partialorder %v741, 1045249613
        %vm774 = vcmp.lt.bf16.partialorder %v742, 1045249613
        %vm775 = vcmp.lt.bf16.partialorder %v743, 1045249613
        %vm776 = vcmp.lt.bf16.partialorder %v744, 1045249613
        %vm777 = vcmp.lt.bf16.partialorder %v745, 1045249613
        %vm778 = vcmp.lt.bf16.partialorder %v746, 1045249613
        %vm779 = vcmp.lt.bf16.partialorder %v747, 1045249613
        %vm780 = vcmp.lt.bf16.partialorder %v748, 1045249613
        %vm781 = vcmp.lt.bf16.partialorder %v749, 1045249613
        %vm782 = vcmp.lt.bf16.partialorder %v750, 1045249613
        %vm783 = vcmp.lt.bf16.partialorder %v751, 1045249613
        %vm784 = vcmp.lt.bf16.partialorder %v752, 1045249613
        %vm785 = vcmp.lt.bf16.partialorder %v753, 1045249613
        %vm786 = vcmp.lt.bf16.partialorder %v754, 1045249613
        %vm787 = vcmp.lt.bf16.partialorder %v755, 1045249613
        %vm788 = vcmp.lt.bf16.partialorder %v756, 1045249613
        %v789 = vsel %vm757, 0, %v725
        %v790 = vsel %vm758, 0, %v726
        %v791 = vsel %vm759, 0, %v727
        %v792 = vsel %vm760, 0, %v728
        %v793 = vsel %vm761, 0, %v729
        %v794 = vsel %vm762, 0, %v730
        %v795 = vsel %vm763, 0, %v731
        %v796 = vsel %vm764, 0, %v732
        %v797 = vsel %vm765, 0, %v733
        %v798 = vsel %vm766, 0, %v734
        %v799 = vsel %vm767, 0, %v735
        %v800 = vsel %vm768, 0, %v736
        %v801 = vsel %vm769, 0, %v737
        %v802 = vsel %vm770, 0, %v738
        %v803 = vsel %vm771, 0, %v739
        %v804 = vsel %vm772, 0, %v740
        %v805 = vsel %vm773, 0, %v741
        %v806 = vsel %vm774, 0, %v742
        %v807 = vsel %vm775, 0, %v743
        %v808 = vsel %vm776, 0, %v744
        %v809 = vsel %vm777, 0, %v745
        %v810 = vsel %vm778, 0, %v746
        %v811 = vsel %vm779, 0, %v747
        %v812 = vsel %vm780, 0, %v748
        %v813 = vsel %vm781, 0, %v749
        %v814 = vsel %vm782, 0, %v750
        %v815 = vsel %vm783, 0, %v751
        %v816 = vsel %vm784, 0, %v752
        %v817 = vsel %vm785, 0, %v753
        %v818 = vsel %vm786, 0, %v754
        %v819 = vsel %vm787, 0, %v755
        %v820 = vsel %vm788, 0, %v756
        %v821 = vld [vmem:[%s202] sm:$0xff]
        %v822 = vld [vmem:[%s202 + $0x8] sm:$0xff]
        %v823 = vld [vmem:[%s202 + $0x10] sm:$0xff]
        %v824 = vld [vmem:[%s202 + $0x18] sm:$0xff]
        %v825 = vld [vmem:[%s202 + $0x20] sm:$0xff]
        %v831 = vunpack.c.l.b16 %v821
        %v832 = vunpack.c.h.b16 %v821
        %v833 = vunpack.c.l.b16 %v822
        %v834 = vunpack.c.h.b16 %v822
        %v835 = vunpack.c.l.b16 %v823
        %v836 = vunpack.c.h.b16 %v823
        %v837 = vunpack.c.l.b16 %v824
        %v838 = vunpack.c.h.b16 %v824
        %v839 = vunpack.c.l.b16 %v825
        %v840 = vunpack.c.h.b16 %v825
        %v841 = vpack.c.b16 %v833, %v831
        %v842 = vpack.c.b16 %v834, %v832
        %v843 = vpack.c.b16 %v837, %v835
        %v844 = vpack.c.b16 %v838, %v836
        %v845 = vpack.c.b16 %v839, %v839
        %v846 = vpack.c.b16 %v840, %v840
        %853 = vmatprep.subr.bf16.mxu0 %v790
        %854 = vmatpush1.bf16.msra.mxu0 %v789
        %855 = vmatprep.subr.bf16.mxu0 %v792
        %856 = vmatpush1.bf16.msra.mxu0 %v791
        %857 = vmatprep.subr.bf16.mxu0 %v794
        %858 = vmatpush1.bf16.msra.mxu0 %v793
        %859 = vmatprep.subr.bf16.mxu0 %v796
        %860 = vmatpush1.bf16.msra.mxu0 %v795
        %861 = vmatprep.subr.bf16.mxu0 %v798
        %862 = vmatpush1.bf16.msra.mxu0 %v797
        %863 = vmatprep.subr.bf16.mxu0 %v800
        %864 = vmatpush1.bf16.msra.mxu0 %v799
        %865 = vmatprep.subr.bf16.mxu0 %v802
        %866 = vmatpush1.bf16.msra.mxu0 %v801
        %867 = vmatprep.subr.bf16.mxu0 %v804
        %868 = vmatpush1.bf16.msra.mxu0 %v803
        %869 = vmatprep.subr.bf16.mxu0 %v806
        %870 = vmatpush1.bf16.msra.mxu0 %v805
        %871 = vmatprep.subr.bf16.mxu0 %v808
        %872 = vmatpush1.bf16.msra.mxu0 %v807
        %873 = vmatprep.subr.bf16.mxu0 %v810
        %874 = vmatpush1.bf16.msra.mxu0 %v809
        %875 = vmatprep.subr.bf16.mxu0 %v812
        %876 = vmatpush1.bf16.msra.mxu0 %v811
        %877 = vmatprep.subr.bf16.mxu0 %v814
        %878 = vmatpush1.bf16.msra.mxu0 %v813
        %879 = vmatprep.subr.bf16.mxu0 %v816
        %880 = vmatpush1.bf16.msra.mxu0 %v815
        %881 = vmatprep.subr.bf16.mxu0 %v818
        %882 = vmatpush1.bf16.msra.mxu0 %v817
        %883 = vmatprep.subr.bf16.mxu0 %v820
        %884 = vmatpush1.bf16.msra.mxu0 %v819
        %885 = vmatprep.mubr.bf16.mxu0 %v842
        %886 = vmatmul.mubr.bf16.gmra.mrb[0].mxu0 %v841
        %v887 = vpop.f32.mrb[0].mxu0
        %v888 = vadd.f32 0.0, %v887
        %v889 = vpop.f32.mrb[0].mxu0
        %v890 = vadd.f32 0.0, %v889
        %v891 = vpop.f32.mrb[0].mxu0
        %v892 = vadd.f32 0.0, %v891
        %v893 = vpop.f32.mrb[0].mxu0
        %v894 = vadd.f32 0.0, %v893
        %895 = vmatprep.mubr.bf16.mxu0 %v844
        %896 = vmatmul.mubr.bf16.gmra.mrb[0].mxu0 %v843
        %v897 = vpop.f32.mrb[0].mxu0
        %v898 = vadd.f32 0.0, %v897
        %v899 = vpop.f32.mrb[0].mxu0
        %v900 = vadd.f32 0.0, %v899
        %v901 = vpop.f32.mrb[0].mxu0
        %v902 = vadd.f32 0.0, %v901
        %v903 = vpop.f32.mrb[0].mxu0
        %v904 = vadd.f32 0.0, %v903
        %905 = vmatprep.mubr.bf16.mxu0 %v846
        %906 = vmatmul.mubr.bf16.gmra.mrb[0].mxu0 %v845
        %v907 = vpop.f32.mrb[0].mxu0
        %v908 = vadd.f32 0.0, %v907
        %v909 = vpop.f32.mrb[0].mxu0
        %v910 = vadd.f32 0.0, %v909
        %v911 = vpop.f32.mrb[0].mxu0
        %v912 = vpop.f32.mrb[0].mxu0
        %913 = vdwg.mxu0
        %v914 = vadd.f32 %v908, 1e-06
        %v915 = vadd.f32 %v910, 1e-06
        %v916 = vrcp.pop %v914
        %v917 = vrcp.pop %v915
        %v918 = vlaneseq
        %v919 = vshrl.u32 %v918, 7
        %v920 = vsub.s32 0, %v919
        %v921 = vrot.slane %v916, %v920
        %v922 = vlaneseq
        %v923 = vshrl.u32 %v922, 7
        %v924 = vsub.s32 0, %v923
        %v925 = vrot.slane %v917, %v924
        %v926 = vmul.f32 %v888, %v921
        %v927 = vmul.f32 %v890, %v925
        %v928 = vmul.f32 %v892, %v921
        %v929 = vmul.f32 %v894, %v925
        %v930 = vmul.f32 %v898, %v921
        %v931 = vmul.f32 %v900, %v925
        %v932 = vmul.f32 %v902, %v921
        %v933 = vmul.f32 %v904, %v925
        %v934 = vmul.f32 %v926, %v926
        %v935 = vmul.f32 %v927, %v927
        %v936 = vmul.f32 %v928, %v928
        %v937 = vmul.f32 %v929, %v929
        %v938 = vmul.f32 %v930, %v930
        %v939 = vmul.f32 %v931, %v931
        %v940 = vmul.f32 %v932, %v932
        %v941 = vmul.f32 %v933, %v933
        %v942 = vadd.f32 %v934, %v936
        %v943 = vadd.f32 %v942, %v938
        %v944 = vadd.f32 %v943, %v940
        %v945 = vrot.slane %v944, 4
        %v946 = vadd.f32 %v944, %v945
        %v947 = vrot.slane %v946, 2
        %v948 = vadd.f32 %v946, %v947
        %v949 = vrot.slane %v948, 1
        %v950 = vadd.f32 %v948, %v949
        %v951 = vadd.f32 %v935, %v937
        %v952 = vadd.f32 %v951, %v939
        %v953 = vadd.f32 %v952, %v941
        %v954 = vrot.slane %v953, 4
        %v955 = vadd.f32 %v953, %v954
        %v956 = vrot.slane %v955, 2
        %v957 = vadd.f32 %v955, %v956
        %v958 = vrot.slane %v957, 1
        %v959 = vadd.f32 %v957, %v958
        %v960 = vadd.f32 %v950, 1e-12
        %v961 = vadd.f32 %v959, 1e-12
        %v962 = vrsqrt.pop %v960
        %v963 = vrsqrt.pop %v961
        %v964 = vmul.f32 %v926, %v962
        %v965 = vmul.f32 %v927, %v963
        %v966 = vmul.f32 %v928, %v962
        %v967 = vmul.f32 %v929, %v963
        %v968 = vmul.f32 %v930, %v962
        %v969 = vmul.f32 %v931, %v963
        %v970 = vmul.f32 %v932, %v962
        %v971 = vmul.f32 %v933, %v963
        %v972 = vld [vmem:[%s2] sm:$0xf]
        %v973 = vpack.c.bf16 %v966, %v964
        %v974 = vpack.c.bf16 %v967, %v965
        %v975 = vpack.c.bf16 %v970, %v968
        %v976 = vpack.c.bf16 %v971, %v969
        %v978 = vsel %vm435, %v972, 0
        %980 = vmatprep.subr.bf16.mxu0 %v974
        %981 = vmatpush1.bf16.msra.mxu0 %v973
        %982 = vmatprep.subr.bf16.mxu0 %v976
        %983 = vmatpush1.bf16.msra.mxu0 %v975
        %984 = vmatprep.subr.bf16.mxu0 0
        %985 = vmatpush1.bf16.msra.mxu0 0
        %986 = vmatprep.subr.bf16.mxu0 0
        %987 = vmatpush1.bf16.msra.mxu0 0
        %988 = vmatprep.subr.bf16.mxu0 0
        %989 = vmatpush1.bf16.msra.mxu0 0
        %990 = vmatprep.subr.bf16.mxu0 0
        %991 = vmatpush1.bf16.msra.mxu0 0
        %992 = vmatprep.subr.bf16.mxu0 0
        %993 = vmatpush1.bf16.msra.mxu0 0
        %994 = vmatprep.subr.bf16.mxu0 0
        %995 = vmatpush1.bf16.msra.mxu0 0
        %996 = vmatprep.subr.bf16.mxu0 0
        %997 = vmatpush1.bf16.msra.mxu0 0
        %998 = vmatprep.subr.bf16.mxu0 0
        %999 = vmatpush1.bf16.msra.mxu0 0
        %1000 = vmatprep.subr.bf16.mxu0 0
        %1001 = vmatpush1.bf16.msra.mxu0 0
        %1002 = vmatprep.subr.bf16.mxu0 0
        %1003 = vmatpush1.bf16.msra.mxu0 0
        %1004 = vmatprep.subr.bf16.mxu0 0
        %1005 = vmatpush1.bf16.msra.mxu0 0
        %1006 = vmatprep.subr.bf16.mxu0 0
        %1007 = vmatpush1.bf16.msra.mxu0 0
        %1008 = vmatprep.subr.bf16.mxu0 0
        %1009 = vmatpush1.bf16.msra.mxu0 0
        %1010 = vmatprep.subr.bf16.mxu0 0
        %1011 = vmatpush1.bf16.msra.mxu0 0
        %1012 = vmatprep.mubr.bf16.mxu0 0
        %1013 = vmatmul.mubr.bf16.gmra.mrb[0].mxu0 %v978
        %v1014 = vpop.f32.mrb[0].mxu0
        %v1015 = vadd.f32 0.0, %v1014
        %v1016 = vpop.f32.mrb[0].mxu0
        %v1017 = vadd.f32 0.0, %v1016
        %v1018 = vpop.f32.mrb[0].mxu0
        %v1019 = vpop.f32.mrb[0].mxu0
        %1020 = vdwg.mxu0
        %1021 = vst [vmem:[%s192] sm:$0xff] %v1015
        %1022 = vst [vmem:[%s192 + $0x8] sm:$0xff] %v1017
        %s1023 = sand.u32 %s112, 1
        %s1024 = scalar_lea.sflag [#allocation3], %s1023
        %s1025 = sand.u32 %s112, 1
        %s1026 = smul.addr %s1025, 16
        %s1027 = scalar_lea.vmem [#allocation2], %s1026
        // Predicated region
        $region33: #{tpu_custom_call.1} parent=31 // pred_check
          %p1028 = pneg %p122
        $region34: #{tpu_custom_call.1} parent=31 // pred_check_branch
          %1030 = sbr.rel (%p1028) target = $region36
        $region35: #{tpu_custom_call.1} parent=31 // pred_region
          %s1031 = smul.u32 2, %s22
          %s1033 = ssub.s32 256, 256
          %1034 = vsyncadd %s1024, %s1033
          %s1035 = smul.addr %s21, 2
          %s1036 = sadd.s32 %s1031, %s1035
          %s1037 = smul.addr %s1036, 128
          %s1038 = scalar_lea.hbm %s3, %s1037
          %s1040 = sshll.u32 %s1027, 4
          %s1041 = int_to_ptr.vmem [resolvable:$true] %s1040
          %1043 = dma.vmem_to_hbm [thread:$0]  %s1041, 256, %s1038, %s1024
        $region36: #{tpu_custom_call.1} parent=31 // pred_fallthru
          _
      $region32: #{tpu_custom_call.1} parent=5 // pred_fallthru
        _
      %p1044 = scmp.le.s32.totalorder 2, %s12
      // Predicated region
      $region37: #{tpu_custom_call.1} parent=5 // pred_check
        %p1045 = pneg %p1044
      $region38: #{tpu_custom_call.1} parent=5 // pred_check_branch
        %1047 = sbr.rel (%p1045) target = $region40
      $region39: #{tpu_custom_call.1} parent=5 // pred_region
        %s1048 = ssub.s32 %s12, 2
        // Predicated region
        $region41: #{tpu_custom_call.1} parent=39 // pred_check
          %p1049 = pneg %p128
        $region42: #{tpu_custom_call.1} parent=39 // pred_check_branch
          %1051 = sbr.rel (%p1049) target = $region44
        $region43: #{tpu_custom_call.1} parent=39 // pred_region
          %s1052 = sand.u32 %s113, 1
          %s1053 = scalar_lea.sflag [#allocation3], %s1052
          %s1054 = sand.u32 %s113, 1
          %s1055 = smul.addr %s1054, 16
          %s1056 = scalar_lea.vmem [#allocation2], %s1055
          %1057 = dma.done %s1053, 256
        $region44: #{tpu_custom_call.1} parent=39 // pred_fallthru
          _
      $region40: #{tpu_custom_call.1} parent=5 // pred_fallthru
        _
    $region6: #{tpu_custom_call.1} parent=1 // loop_footer
      %s16 = sadd.s32 1, %s12
    $region7: #{tpu_custom_call.1} parent=1 // loop_footer_branch
      %11 = sbr.rel target = $region3
    $region8: #{tpu_custom_call.1} parent=1 // loop_exit
      _
    %1058 = vsyncpa [#allocation3], 1
    %s1059 = scalar_lea.sflag [#allocation3], 1
    %1060 = vsyncpa %s1059, 1

</llo_original>
